<compile_context>
chip_gen: v7x
topology: tpu7x:2x2x1
jax: 0.10.0
libtpu: 0.0.40
codegen_flags: <defaults>
</compile_context>

<pallas_src>
import functools

import jax
import jax.numpy as jnp
import numpy as np
from jax.experimental import pallas as pl
from jax.experimental.pallas import tpu as pltpu

_EPS = 1e-5  # nn.BatchNorm2d default eps


# --------------------------------- kernel ------------------------------------

def residual_block_kernel(col1_ref, w1_ref, g1_ref, b1_ref,
                          w2_ref, g2_ref, b2_ref,
                          vmask_ref, embmask_ref,
                          out_ref,
                          xpad2_ref, col2_ref,
                          *, N, C, H, W):
    """Fused Conv-BN-ReLU-Conv-BN-add-ReLU on a batch-packed frame layout.

    Rows  r = n*C + c  (N*C = 8 here -> one full sublane tile).
    Cols  q = i*(W+2) + j  are flattened padded-frame coordinates: conv outputs
    are valid for i < H, j < W, and every 3x3 tap is a constant lane shift
    d = dy*(W+2) + dx.  Tap slices over-read into the zeroed TAIL region for
    invalid output positions; those positions are masked for BN stats and
    sliced off by the wrapper, so the over-read is harmless by construction.
    """
    R = N * C
    Wp = W + 2
    B = (H + 2) * Wp                 # frame length (== out_ref.shape[1])
    TAIL = 2 * Wp + 2                # max 3x3 tap offset
    shift = Wp + 1                   # output-frame -> padded-frame origin offset
    inv_cnt = 1.0 / (N * H * W)

    vmask = vmask_ref[...]           # (1, B) valid conv-output positions

    def batchnorm(y, g_ref, b_ref):
        # Training-mode batch stats (biased variance), masked to the N*H*W
        # valid positions.  Per-(sample, channel) row sums are combined into
        # per-channel sums with sublane rolls by multiples of C (rows n*C + c).
        ym = y * vmask
        p1 = jnp.sum(ym, axis=1, keepdims=True)           # (R, 1)
        p2 = jnp.sum(ym * y, axis=1, keepdims=True)       # (R, 1)
        s1, s2 = p1, p2
        for i in range(1, N):
            s1 = s1 + pltpu.roll(p1, shift=i * C, axis=0)
            s2 = s2 + pltpu.roll(p2, shift=i * C, axis=0)
        mean = s1 * inv_cnt
        # One-pass E[x^2]-E[x]^2 (clamped >= 0 to guard against cancellation).
        var = jnp.maximum(s2 * inv_cnt - mean * mean, 0.0)
        return (y - mean) * jax.lax.rsqrt(var + _EPS) * g_ref[...] + b_ref[...]

    # ---- conv1 (im2col built in wrapper) -> BN -> ReLU, stays in VMEM ----
    z1 = jnp.dot(w1_ref[...], col1_ref[...], preferred_element_type=jnp.float32)
    y1 = jnp.maximum(batchnorm(z1, g1_ref, b1_ref), 0.0)          # (R, B)

    # ---- re-embed y1 as conv2's zero-padded input frame ----
    # Only the margins not covered by the shifted masked write need zeros.
    xpad2_ref[:, 0:shift] = jnp.zeros((R, shift), jnp.float32)
    xpad2_ref[:, B:B + TAIL] = jnp.zeros((R, TAIL), jnp.float32)
    xpad2_ref[:, shift:B] = y1[:, 0:B - shift] * embmask_ref[...]

    # ---- conv2: in-kernel im2col (9 tile-aligned 8-row tap copies) + one dot ----
    tap_offsets = [dy * Wp + dx for dy in range(3) for dx in range(3)]
    for k, d in enumerate(tap_offsets):
        col2_ref[k * R:(k + 1) * R, :] = xpad2_ref[:, d:d + B]
    z2 = jnp.dot(w2_ref[...], col2_ref[...], preferred_element_type=jnp.float32)
    y2 = batchnorm(z2, g2_ref, b2_ref)

    # ---- + identity residual -> ReLU ----
    # The centre tap (k == 4, offset == shift) of conv1's im2col matrix is
    # exactly x in output-frame coordinates at every valid position, and its
    # rows are sublane/lane aligned -> clean residual read, no extra input.
    resid = col1_ref[4 * R:5 * R, :]
    out_ref[...] = jnp.maximum(y2 + resid, 0.0)     # single lane-dense store


# -------------------------------- wrapper -------------------------------------

@jax.jit
def residual_block(x_nchw, w1_oihw, g1, b1, w2_oihw, g2, b2):
    """ResidualBlock.forward (stride=1, shortcut=None). NCHW in / NCHW out.

    w*_oihw: PyTorch Conv2d weights (O, I, 3, 3); g*, b*: BatchNorm affine (C,).
    """
    N, Cin, H, W = x_nchw.shape
    Cout = w1_oihw.shape[0]
    assert Cin == Cout, "identity shortcut requires inchannel == outchannel"
    C = Cout
    R = N * C                              # sublane-packed row count (8 here)
    Wp, Hp = W + 2, H + 2
    B = Hp * Wp
    shift = Wp + 1
    tap_offsets = [dy * Wp + dx for dy in range(3) for dx in range(3)]
    TAIL = 2 * Wp + 2
    # Explicit over-read contract: tap slices read frame columns [d, d + B);
    # frames are B + TAIL wide and everything outside the interior is zero.
    assert TAIL == max(tap_offsets)

    f32 = jnp.float32

    # --- wrapper-side layout plumbing (cheap XLA ops, fused under jit) ---
    # Zero-padded input frame, batch packed into sublanes: row = n*C + c.
    xpad1 = jnp.pad(x_nchw.astype(f32), ((0, 0), (0, 0), (1, 1), (1, 1)))
    xpad1 = jnp.pad(xpad1.reshape(R, B), ((0, 0), (0, TAIL)))          # (R, B+TAIL)
    # Conv1's im2col matrix built here; only conv2's im2col stays in-kernel.
    col1 = jnp.concatenate([xpad1[:, d:d + B] for d in tap_offsets], axis=0)  # (9R, B)

    # Block-diagonal packed conv weights: row n*C+co, col k*R + n*C + ci.
    eye_n = jnp.eye(N, dtype=f32)

    def pack_w(w):
        wk = jnp.transpose(w.astype(f32), (2, 3, 0, 1)).reshape(9, Cout, Cin)
        return jnp.einsum("nm,koi->nokmi", eye_n, wk).reshape(R, 9 * R)

    w1p, w2p = pack_w(w1_oihw), pack_w(w2_oihw)

    def pack_affine(v):
        return jnp.tile(v.astype(f32).reshape(1, C), (N, 1)).reshape(R, 1)

    g1p, b1p, g2p, b2p = map(pack_affine, (g1, b1, g2, b2))

    # Compile-time masks over the flattened frame (numpy constants).
    q = np.arange(B)
    qr, qc = q // Wp, q % Wp
    vmask = ((qr < H) & (qc < W)).astype(np.float32)[None, :]          # (1, B)
    p = np.arange(shift, B)
    pr, pc = p // Wp, p % Wp
    embmask = ((pr >= 1) & (pr <= H) & (pc >= 1) & (pc <= W)
               ).astype(np.float32)[None, :]                           # (1, B-shift)

    kernel = functools.partial(residual_block_kernel, N=N, C=C, H=H, W=W)
    vspec = pl.BlockSpec(memory_space=pltpu.MemorySpace.VMEM)

    # VMEM budget computed from the actual buffers (not a hard-coded 32 MiB).
    n_elems = (col1.size + w1p.size + w2p.size + 4 * R
               + vmask.size + embmask.size          # inputs
               + R * B                              # output
               + R * (B + TAIL) + 9 * R * B)        # scratch
    vmem_limit = int(2 * 4 * n_elems) + (2 << 20)   # 2x + headroom for temporaries

    outf = pl.pallas_call(
        kernel,
        out_shape=jax.ShapeDtypeStruct((R, B), f32),
        in_specs=[vspec] * 9,
        out_specs=vspec,
        scratch_shapes=[
            pltpu.VMEM((R, B + TAIL), f32),     # conv2 padded frame
            pltpu.VMEM((9 * R, B), f32),        # conv2 im2col buffer (8-row tap groups)
        ],
        compiler_params=pltpu.CompilerParams(vmem_limit_bytes=vmem_limit),
    )(col1, w1p, g1p, b1p, w2p, g2p, b2p,
      jnp.asarray(vmask), jnp.asarray(embmask))

    # Epilogue layout plumbing: (N*C, Hp*Wp) frame is already NCHW after reshape.
    return outf.reshape(N, C, Hp, Wp)[:, :, :H, :W]


# ---------------------------- pure-JAX reference -------------------------------

def _conv_ref(x_nchw, w_oihw):
    return jax.lax.conv_general_dilated(
        x_nchw, w_oihw, window_strides=(1, 1), padding="SAME",
        dimension_numbers=("NCHW", "OIHW", "NCHW"))


def _bn_ref(y, g, b):
    mean = jnp.mean(y, axis=(0, 2, 3), keepdims=True)
    var = jnp.mean((y - mean) ** 2, axis=(0, 2, 3), keepdims=True)
    return ((y - mean) * jax.lax.rsqrt(var + _EPS) * g.reshape(1, -1, 1, 1)
            + b.reshape(1, -1, 1, 1))


def residual_block_ref(x, w1, g1, b1, w2, g2, b2):
    y = jnp.maximum(_bn_ref(_conv_ref(x, w1), g1, b1), 0.0)
    y = _bn_ref(_conv_ref(y, w2), g2, b2)
    return jnp.maximum(y + x, 0.0)


# ----------------------------------- main --------------------------------------

if __name__ == "__main__":
    # inchannel == outchannel == 4, stride=1, shortcut=None (identity residual)
    N, C, H, W = 2, 4, 16, 16
    key = jax.random.PRNGKey(0)
    kx, kw1, kw2, kg1, kb1, kg2, kb2 = jax.random.split(key, 7)

    x = jax.random.normal(kx, (N, C, H, W), jnp.float32)               # PyTorch NCHW input
    w1 = 0.2 * jax.random.normal(kw1, (C, C, 3, 3), jnp.float32)       # Conv2d weight (O,I,3,3)
    w2 = 0.2 * jax.random.normal(kw2, (C, C, 3, 3), jnp.float32)
    g1 = 1.0 + 0.1 * jax.random.normal(kg1, (C,), jnp.float32)         # BN gamma / beta
    b1 = 0.1 * jax.random.normal(kb1, (C,), jnp.float32)
    g2 = 1.0 + 0.1 * jax.random.normal(kg2, (C,), jnp.float32)
    b2 = 0.1 * jax.random.normal(kb2, (C,), jnp.float32)

    out = jax.block_until_ready(residual_block(x, w1, g1, b1, w2, g2, b2))

    ref = residual_block_ref(x, w1, g1, b1, w2, g2, b2)
    assert out.shape == (N, C, H, W)
    np.testing.assert_allclose(np.asarray(out), np.asarray(ref), atol=5e-4, rtol=5e-4)
    print("KERNEL_OK")
</pallas_src>

<mosaic_0001>
module attributes {stable_mosaic.version = 11 : i64} {
  func.func @residual_block_kernel(%arg0: memref<72x324xf32, #tpu.memory_space<vmem>>, %arg1: memref<8x72xf32, #tpu.memory_space<vmem>>, %arg2: memref<8x1xf32, #tpu.memory_space<vmem>>, %arg3: memref<8x1xf32, #tpu.memory_space<vmem>>, %arg4: memref<8x72xf32, #tpu.memory_space<vmem>>, %arg5: memref<8x1xf32, #tpu.memory_space<vmem>>, %arg6: memref<8x1xf32, #tpu.memory_space<vmem>>, %arg7: memref<1x324xf32, #tpu.memory_space<vmem>>, %arg8: memref<1x305xf32, #tpu.memory_space<vmem>>, %arg9: memref<8x324xf32, #tpu.memory_space<vmem>>, %arg10: memref<8x362xf32, #tpu.memory_space<vmem>>, %arg11: memref<72x324xf32, #tpu.memory_space<vmem>>) attributes {dimension_semantics = [], scalar_prefetch = 0 : i64, scratch_operands = 2 : i64, tpu.core_type = #tpu.core_type<tc>} {
    %c0 = arith.constant 0 : index
    %c0_0 = arith.constant 0 : index
    %0 = vector.load %arg7[%c0, %c0_0] : memref<1x324xf32, #tpu.memory_space<vmem>>, vector<1x324xf32>
    %c0_1 = arith.constant 0 : index
    %c0_2 = arith.constant 0 : index
    %1 = vector.load %arg1[%c0_1, %c0_2] : memref<8x72xf32, #tpu.memory_space<vmem>>, vector<8x72xf32>
    %c0_3 = arith.constant 0 : index
    %c0_4 = arith.constant 0 : index
    %2 = vector.load %arg0[%c0_3, %c0_4] : memref<72x324xf32, #tpu.memory_space<vmem>>, vector<72x324xf32>
    %cst = arith.constant dense<0.000000e+00> : vector<8x324xf32>
    %3 = tpu.matmul %1, %2, %cst {dimension_numbers = #tpu.dot_dimension_numbers<[1], [0], [0], [1], [0, 0, 1, 1], [], []>} : vector<8x72xf32>, vector<72x324xf32>, vector<8x324xf32> -> vector<8x324xf32>
    %4 = vector.broadcast %0 : vector<1x324xf32> to vector<8x324xf32>
    %5 = arith.mulf %3, %4 : vector<8x324xf32>
    %cst_5 = arith.constant dense<0.000000e+00> : vector<8xf32>
    %6 = vector.multi_reduction <add>, %5, %cst_5 [1] : vector<8x324xf32> to vector<8xf32>
    %7 = vector.shape_cast %6 : vector<8xf32> to vector<8x1xf32>
    %8 = arith.mulf %5, %3 : vector<8x324xf32>
    %cst_6 = arith.constant dense<0.000000e+00> : vector<8xf32>
    %9 = vector.multi_reduction <add>, %8, %cst_6 [1] : vector<8x324xf32> to vector<8xf32>
    %10 = vector.shape_cast %9 : vector<8xf32> to vector<8x1xf32>
    %c4_i32 = arith.constant 4 : i32
    %11 = tpu.dynamic_rotate %7 by %c4_i32 dim 0 : vector<8x1xf32>, i32 -> vector<8x1xf32>
    %12 = arith.addf %7, %11 : vector<8x1xf32>
    %c4_i32_7 = arith.constant 4 : i32
    %13 = tpu.dynamic_rotate %10 by %c4_i32_7 dim 0 : vector<8x1xf32>, i32 -> vector<8x1xf32>
    %14 = arith.addf %10, %13 : vector<8x1xf32>
    %cst_8 = arith.constant 0.001953125 : f32
    %15 = vector.broadcast %cst_8 : f32 to vector<8x1xf32>
    %16 = arith.mulf %12, %15 : vector<8x1xf32>
    %cst_9 = arith.constant 0.001953125 : f32
    %17 = vector.broadcast %cst_9 : f32 to vector<8x1xf32>
    %18 = arith.mulf %14, %17 : vector<8x1xf32>
    %19 = arith.mulf %16, %16 : vector<8x1xf32>
    %20 = arith.subf %18, %19 : vector<8x1xf32>
    %cst_10 = arith.constant 0.000000e+00 : f32
    %21 = vector.broadcast %cst_10 : f32 to vector<8x1xf32>
    %22 = arith.maximumf %20, %21 : vector<8x1xf32>
    %23 = vector.broadcast %16 : vector<8x1xf32> to vector<8x324xf32>
    %24 = arith.subf %3, %23 : vector<8x324xf32>
    %cst_11 = arith.constant 9.99999974E-6 : f32
    %25 = vector.broadcast %cst_11 : f32 to vector<8x1xf32>
    %26 = arith.addf %22, %25 : vector<8x1xf32>
    %27 = math.rsqrt %26 : vector<8x1xf32>
    %28 = vector.broadcast %27 : vector<8x1xf32> to vector<8x324xf32>
    %29 = arith.mulf %24, %28 : vector<8x324xf32>
    %c0_12 = arith.constant 0 : index
    %c0_13 = arith.constant 0 : index
    %30 = vector.load %arg2[%c0_12, %c0_13] : memref<8x1xf32, #tpu.memory_space<vmem>>, vector<8x1xf32>
    %31 = vector.broadcast %30 : vector<8x1xf32> to vector<8x324xf32>
    %32 = arith.mulf %29, %31 : vector<8x324xf32>
    %c0_14 = arith.constant 0 : index
    %c0_15 = arith.constant 0 : index
    %33 = vector.load %arg3[%c0_14, %c0_15] : memref<8x1xf32, #tpu.memory_space<vmem>>, vector<8x1xf32>
    %34 = vector.broadcast %33 : vector<8x1xf32> to vector<8x324xf32>
    %35 = arith.addf %32, %34 : vector<8x324xf32>
    %cst_16 = arith.constant 0.000000e+00 : f32
    %36 = vector.broadcast %cst_16 : f32 to vector<8x324xf32>
    %37 = arith.maximumf %35, %36 : vector<8x324xf32>
    %cst_17 = arith.constant 0.000000e+00 : f32
    %38 = vector.broadcast %cst_17 : f32 to vector<8x19xf32>
    %c0_18 = arith.constant 0 : index
    %c0_19 = arith.constant 0 : index
    %39 = vector.load %arg10[%c0_18, %c0_19] : memref<8x362xf32, #tpu.memory_space<vmem>>, vector<8x19xf32>
    tpu.vector_store %arg10[%c0_18, %c0_19], %38 {strides = array<i32>} : memref<8x362xf32, #tpu.memory_space<vmem>>, vector<8x19xf32>,
    %cst_20 = arith.constant 0.000000e+00 : f32
    %40 = vector.broadcast %cst_20 : f32 to vector<8x38xf32>
    %c0_21 = arith.constant 0 : index
    %c324 = arith.constant 324 : index
    %41 = vector.load %arg10[%c0_21, %c324] : memref<8x362xf32, #tpu.memory_space<vmem>>, vector<8x38xf32>
    tpu.vector_store %arg10[%c0_21, %c324], %40 {strides = array<i32>} : memref<8x362xf32, #tpu.memory_space<vmem>>, vector<8x38xf32>,
    %42 = vector.extract_strided_slice %37 {offsets = [0, 0], sizes = [8, 305], strides = [1, 1]} : vector<8x324xf32> to vector<8x305xf32>
    %c0_22 = arith.constant 0 : index
    %c0_23 = arith.constant 0 : index
    %43 = vector.load %arg8[%c0_22, %c0_23] : memref<1x305xf32, #tpu.memory_space<vmem>>, vector<1x305xf32>
    %44 = vector.broadcast %43 : vector<1x305xf32> to vector<8x305xf32>
    %45 = arith.mulf %42, %44 : vector<8x305xf32>
    %c0_24 = arith.constant 0 : index
    %c19 = arith.constant 19 : index
    %46 = vector.load %arg10[%c0_24, %c19] : memref<8x362xf32, #tpu.memory_space<vmem>>, vector<8x305xf32>
    tpu.vector_store %arg10[%c0_24, %c19], %45 {strides = array<i32>} : memref<8x362xf32, #tpu.memory_space<vmem>>, vector<8x305xf32>,
    %c0_25 = arith.constant 0 : index
    %c0_26 = arith.constant 0 : index
    %47 = vector.load %arg10[%c0_25, %c0_26] : memref<8x362xf32, #tpu.memory_space<vmem>>, vector<8x324xf32>
    %c0_27 = arith.constant 0 : index
    %c0_28 = arith.constant 0 : index
    %48 = vector.load %arg11[%c0_27, %c0_28] : memref<72x324xf32, #tpu.memory_space<vmem>>, vector<8x324xf32>
    tpu.vector_store %arg11[%c0_27, %c0_28], %47 {strides = array<i32>} : memref<72x324xf32, #tpu.memory_space<vmem>>, vector<8x324xf32>,
    %c0_29 = arith.constant 0 : index
    %c1 = arith.constant 1 : index
    %49 = vector.load %arg10[%c0_29, %c1] : memref<8x362xf32, #tpu.memory_space<vmem>>, vector<8x324xf32>
    %c8 = arith.constant 8 : index
    %c0_30 = arith.constant 0 : index
    %50 = vector.load %arg11[%c8, %c0_30] : memref<72x324xf32, #tpu.memory_space<vmem>>, vector<8x324xf32>
    tpu.vector_store %arg11[%c8, %c0_30], %49 {strides = array<i32>} : memref<72x324xf32, #tpu.memory_space<vmem>>, vector<8x324xf32>,
    %c0_31 = arith.constant 0 : index
    %c2 = arith.constant 2 : index
    %51 = vector.load %arg10[%c0_31, %c2] : memref<8x362xf32, #tpu.memory_space<vmem>>, vector<8x324xf32>
    %c16 = arith.constant 16 : index
    %c0_32 = arith.constant 0 : index
    %52 = vector.load %arg11[%c16, %c0_32] : memref<72x324xf32, #tpu.memory_space<vmem>>, vector<8x324xf32>
    tpu.vector_store %arg11[%c16, %c0_32], %51 {strides = array<i32>} : memref<72x324xf32, #tpu.memory_space<vmem>>, vector<8x324xf32>,
    %c0_33 = arith.constant 0 : index
    %c18 = arith.constant 18 : index
    %53 = vector.load %arg10[%c0_33, %c18] : memref<8x362xf32, #tpu.memory_space<vmem>>, vector<8x324xf32>
    %c24 = arith.constant 24 : index
    %c0_34 = arith.constant 0 : index
    %54 = vector.load %arg11[%c24, %c0_34] : memref<72x324xf32, #tpu.memory_space<vmem>>, vector<8x324xf32>
    tpu.vector_store %arg11[%c24, %c0_34], %53 {strides = array<i32>} : memref<72x324xf32, #tpu.memory_space<vmem>>, vector<8x324xf32>,
    %c0_35 = arith.constant 0 : index
    %c19_36 = arith.constant 19 : index
    %55 = vector.load %arg10[%c0_35, %c19_36] : memref<8x362xf32, #tpu.memory_space<vmem>>, vector<8x324xf32>
    %c32 = arith.constant 32 : index
    %c0_37 = arith.constant 0 : index
    %56 = vector.load %arg11[%c32, %c0_37] : memref<72x324xf32, #tpu.memory_space<vmem>>, vector<8x324xf32>
    tpu.vector_store %arg11[%c32, %c0_37], %55 {strides = array<i32>} : memref<72x324xf32, #tpu.memory_space<vmem>>, vector<8x324xf32>,
    %c0_38 = arith.constant 0 : index
    %c20 = arith.constant 20 : index
    %57 = vector.load %arg10[%c0_38, %c20] : memref<8x362xf32, #tpu.memory_space<vmem>>, vector<8x324xf32>
    %c40 = arith.constant 40 : index
    %c0_39 = arith.constant 0 : index
    %58 = vector.load %arg11[%c40, %c0_39] : memref<72x324xf32, #tpu.memory_space<vmem>>, vector<8x324xf32>
    tpu.vector_store %arg11[%c40, %c0_39], %57 {strides = array<i32>} : memref<72x324xf32, #tpu.memory_space<vmem>>, vector<8x324xf32>,
    %c0_40 = arith.constant 0 : index
    %c36 = arith.constant 36 : index
    %59 = vector.load %arg10[%c0_40, %c36] : memref<8x362xf32, #tpu.memory_space<vmem>>, vector<8x324xf32>
    %c48 = arith.constant 48 : index
    %c0_41 = arith.constant 0 : index
    %60 = vector.load %arg11[%c48, %c0_41] : memref<72x324xf32, #tpu.memory_space<vmem>>, vector<8x324xf32>
    tpu.vector_store %arg11[%c48, %c0_41], %59 {strides = array<i32>} : memref<72x324xf32, #tpu.memory_space<vmem>>, vector<8x324xf32>,
    %c0_42 = arith.constant 0 : index
    %c37 = arith.constant 37 : index
    %61 = vector.load %arg10[%c0_42, %c37] : memref<8x362xf32, #tpu.memory_space<vmem>>, vector<8x324xf32>
    %c56 = arith.constant 56 : index
    %c0_43 = arith.constant 0 : index
    %62 = vector.load %arg11[%c56, %c0_43] : memref<72x324xf32, #tpu.memory_space<vmem>>, vector<8x324xf32>
    tpu.vector_store %arg11[%c56, %c0_43], %61 {strides = array<i32>} : memref<72x324xf32, #tpu.memory_space<vmem>>, vector<8x324xf32>,
    %c0_44 = arith.constant 0 : index
    %c38 = arith.constant 38 : index
    %63 = vector.load %arg10[%c0_44, %c38] : memref<8x362xf32, #tpu.memory_space<vmem>>, vector<8x324xf32>
    %c64 = arith.constant 64 : index
    %c0_45 = arith.constant 0 : index
    %64 = vector.load %arg11[%c64, %c0_45] : memref<72x324xf32, #tpu.memory_space<vmem>>, vector<8x324xf32>
    tpu.vector_store %arg11[%c64, %c0_45], %63 {strides = array<i32>} : memref<72x324xf32, #tpu.memory_space<vmem>>, vector<8x324xf32>,
    %c0_46 = arith.constant 0 : index
    %c0_47 = arith.constant 0 : index
    %65 = vector.load %arg4[%c0_46, %c0_47] : memref<8x72xf32, #tpu.memory_space<vmem>>, vector<8x72xf32>
    %c0_48 = arith.constant 0 : index
    %c0_49 = arith.constant 0 : index
    %66 = vector.load %arg11[%c0_48, %c0_49] : memref<72x324xf32, #tpu.memory_space<vmem>>, vector<72x324xf32>
    %cst_50 = arith.constant dense<0.000000e+00> : vector<8x324xf32>
    %67 = tpu.matmul %65, %66, %cst_50 {dimension_numbers = #tpu.dot_dimension_numbers<[1], [0], [0], [1], [0, 0, 1, 1], [], []>} : vector<8x72xf32>, vector<72x324xf32>, vector<8x324xf32> -> vector<8x324xf32>
    %68 = vector.broadcast %0 : vector<1x324xf32> to vector<8x324xf32>
    %69 = arith.mulf %67, %68 : vector<8x324xf32>
    %cst_51 = arith.constant dense<0.000000e+00> : vector<8xf32>
    %70 = vector.multi_reduction <add>, %69, %cst_51 [1] : vector<8x324xf32> to vector<8xf32>
    %71 = vector.shape_cast %70 : vector<8xf32> to vector<8x1xf32>
    %72 = arith.mulf %69, %67 : vector<8x324xf32>
    %cst_52 = arith.constant dense<0.000000e+00> : vector<8xf32>
    %73 = vector.multi_reduction <add>, %72, %cst_52 [1] : vector<8x324xf32> to vector<8xf32>
    %74 = vector.shape_cast %73 : vector<8xf32> to vector<8x1xf32>
    %c4_i32_53 = arith.constant 4 : i32
    %75 = tpu.dynamic_rotate %71 by %c4_i32_53 dim 0 : vector<8x1xf32>, i32 -> vector<8x1xf32>
    %76 = arith.addf %71, %75 : vector<8x1xf32>
    %c4_i32_54 = arith.constant 4 : i32
    %77 = tpu.dynamic_rotate %74 by %c4_i32_54 dim 0 : vector<8x1xf32>, i32 -> vector<8x1xf32>
    %78 = arith.addf %74, %77 : vector<8x1xf32>
    %cst_55 = arith.constant 0.001953125 : f32
    %79 = vector.broadcast %cst_55 : f32 to vector<8x1xf32>
    %80 = arith.mulf %76, %79 : vector<8x1xf32>
    %cst_56 = arith.constant 0.001953125 : f32
    %81 = vector.broadcast %cst_56 : f32 to vector<8x1xf32>
    %82 = arith.mulf %78, %81 : vector<8x1xf32>
    %83 = arith.mulf %80, %80 : vector<8x1xf32>
    %84 = arith.subf %82, %83 : vector<8x1xf32>
    %cst_57 = arith.constant 0.000000e+00 : f32
    %85 = vector.broadcast %cst_57 : f32 to vector<8x1xf32>
    %86 = arith.maximumf %84, %85 : vector<8x1xf32>
    %87 = vector.broadcast %80 : vector<8x1xf32> to vector<8x324xf32>
    %88 = arith.subf %67, %87 : vector<8x324xf32>
    %cst_58 = arith.constant 9.99999974E-6 : f32
    %89 = vector.broadcast %cst_58 : f32 to vector<8x1xf32>
    %90 = arith.addf %86, %89 : vector<8x1xf32>
    %91 = math.rsqrt %90 : vector<8x1xf32>
    %92 = vector.broadcast %91 : vector<8x1xf32> to vector<8x324xf32>
    %93 = arith.mulf %88, %92 : vector<8x324xf32>
    %c0_59 = arith.constant 0 : index
    %c0_60 = arith.constant 0 : index
    %94 = vector.load %arg5[%c0_59, %c0_60] : memref<8x1xf32, #tpu.memory_space<vmem>>, vector<8x1xf32>
    %95 = vector.broadcast %94 : vector<8x1xf32> to vector<8x324xf32>
    %96 = arith.mulf %93, %95 : vector<8x324xf32>
    %c0_61 = arith.constant 0 : index
    %c0_62 = arith.constant 0 : index
    %97 = vector.load %arg6[%c0_61, %c0_62] : memref<8x1xf32, #tpu.memory_space<vmem>>, vector<8x1xf32>
    %98 = vector.broadcast %97 : vector<8x1xf32> to vector<8x324xf32>
    %99 = arith.addf %96, %98 : vector<8x324xf32>
    %c32_63 = arith.constant 32 : index
    %c0_64 = arith.constant 0 : index
    %100 = vector.load %arg0[%c32_63, %c0_64] : memref<72x324xf32, #tpu.memory_space<vmem>>, vector<8x324xf32>
    %101 = arith.addf %99, %100 : vector<8x324xf32>
    %cst_65 = arith.constant 0.000000e+00 : f32
    %102 = vector.broadcast %cst_65 : f32 to vector<8x324xf32>
    %103 = arith.maximumf %101, %102 : vector<8x324xf32>
    %c0_66 = arith.constant 0 : index
    %c0_67 = arith.constant 0 : index
    %104 = vector.load %arg9[%c0_66, %c0_67] : memref<8x324xf32, #tpu.memory_space<vmem>>, vector<8x324xf32>
    tpu.vector_store %arg9[%c0_66, %c0_67], %103 {strides = array<i32>} : memref<8x324xf32, #tpu.memory_space<vmem>>, vector<8x324xf32>,
    return
  }
}

</mosaic_0001>

<llo_original>
// kernel: tile.18
$region0: #{tile.18}
  #allocation0 [shape = 's32[1]{0}', space=sflag, size = 0x4, scoped, tag = 'scoped memory for tile.18']
  %s0 = inlined_call_operand.vmem [shape: f32[4], index: 0, kind: input, shape index: {}]
  %s1 = inlined_call_operand.vmem [shape: f32[2,1,1,4], index: 1, kind: output, shape index: {}]
  // Predicated region
  $region2: #{tile.18} parent=0 // pred_check
    _
  $region3: #{tile.18} parent=0 // pred_check_branch
    %3 = sbr.rel (0) target = $region5
  $region4: #{tile.18} parent=0 // pred_region
    _
  $region5: #{tile.18} parent=0 // pred_fallthru
    _
  %v4 = vld [vmem:[%s0] ss:$0 sm:$0xff]
  %5 = vst [vmem:[%s1] sm:$0x3] %v4

// kernel: tile.3
$region0: #{tile.3}
  %s0 = inlined_call_operand.vmem [shape: f32[2,1,1,4], index: 0, kind: input, shape index: {}]
  %s1 = inlined_call_operand.vmem [shape: f32[8,1], index: 1, kind: output, shape index: {}]
  $region1: #{tile.3} parent=0
    #allocation0 [shape = 'u8[4096]{0}', space=vmem, size = 0x1000, scoped, tag = 'scoped mem for input reshape']
    %s3 = sshllo.u32 0, 2
    %v4 = vld [vmem:[%s0] sm:%s3]
    %5 = vst [vmem:[#allocation0] sm:%s3] %v4
    %v6 = vld [vmem:[#allocation0] sm:$0x3]
    %vm7 = vcmask 7168
    %8 = vst.msk [vmem:[%s1] ss:$4 sm:$0x3] %vm7, %v6
    %v9 = vld [vmem:[#allocation0] sm:$0x3]
    %10 = vrot.lane.b32.xlu0 %v9, 127
    %v11 = vpop.permute.xlu0 %10
    %vm12 = vcmask 7168
    %s13 = scalar_lea.vmem %s1, 1
    %14 = vst.msk [vmem:[%s13] ss:$4 sm:$0x3] %vm12, %v11
    %v15 = vld [vmem:[#allocation0] sm:$0x3]
    %16 = vrot.lane.b32.xlu0 %v15, 126
    %v17 = vpop.permute.xlu0 %16
    %vm18 = vcmask 7168
    %s19 = scalar_lea.vmem %s1, 2
    %20 = vst.msk [vmem:[%s19] ss:$4 sm:$0x3] %vm18, %v17
    %v21 = vld [vmem:[#allocation0] sm:$0x3]
    %22 = vrot.lane.b32.xlu0 %v21, 125
    %v23 = vpop.permute.xlu0 %22
    %vm24 = vcmask 7168
    %s25 = scalar_lea.vmem %s1, 3
    %26 = vst.msk [vmem:[%s25] ss:$4 sm:$0x3] %vm24, %v23

// kernel: residual_block.1
$region0: #{residual_block.1}
  #allocation0 [shape = 'u32[]', space=smem, size = 0x4, offset = 0x4, fixed_abs, tag = 'smem constant byte address 0x4 - core index']
  #allocation1 [shape = 'u32[144,128]{1,0:T(1,128)}', space=vmem, size = 0x12000, scoped, tag = 'internal scratch']
  #allocation2 [shape = 'f32[8,362]{1,0:T(8,128)}', space=vmem, size = 0x3000, scoped, tag = 'scratch operand']
  #allocation3 [shape = 'f32[72,324]{1,0:T(8,128)}', space=vmem, size = 0x1b000, scoped, tag = 'scratch operand']
  %s0 = inlined_call_operand.vmem [shape: f32[72,324], index: 0, kind: input, shape index: {}]
  %s1 = inlined_call_operand.vmem [shape: f32[8,72], index: 1, kind: input, shape index: {}]
  %s2 = inlined_call_operand.vmem [shape: f32[8,1], index: 2, kind: input, shape index: {}]
  %s3 = inlined_call_operand.vmem [shape: f32[8,1], index: 3, kind: input, shape index: {}]
  %s4 = inlined_call_operand.vmem [shape: f32[8,72], index: 4, kind: input, shape index: {}]
  %s5 = inlined_call_operand.vmem [shape: f32[8,1], index: 5, kind: input, shape index: {}]
  %s6 = inlined_call_operand.vmem [shape: f32[8,1], index: 6, kind: input, shape index: {}]
  %s7 = inlined_call_operand.vmem [shape: f32[1,324], index: 7, kind: input, shape index: {}]
  %s8 = inlined_call_operand.vmem [shape: f32[1,305], index: 8, kind: input, shape index: {}]
  %s9 = inlined_call_operand.vmem [shape: f32[8,324], index: 9, kind: output, shape index: {}]
  %s10 = sld [smem:[#allocation0]]
  $region46: #{residual_block.1} parent=0
    _
  %s12 = ssub.s32 1, %s10
  %s13 = scalar_select 0, %s12, %s10
  // Predicated region
  $region2: #{residual_block.1} parent=0 // pred_check
    _
  $region3: #{residual_block.1} parent=0 // pred_check_branch
    %15 = sbr.rel (0) target = $region5
  $region4: #{residual_block.1} parent=0 // pred_region
    _
  $region5: #{residual_block.1} parent=0 // pred_fallthru
    _
  // Predicated region
  $region6: #{residual_block.1} parent=0 // pred_check
    _
  $region7: #{residual_block.1} parent=0 // pred_check_branch
    %17 = sbr.rel (0) target = $region9
  $region8: #{residual_block.1} parent=0 // pred_region
    _
  $region9: #{residual_block.1} parent=0 // pred_fallthru
    _
  // Predicated region
  $region10: #{residual_block.1} parent=0 // pred_check
    _
  $region11: #{residual_block.1} parent=0 // pred_check_branch
    %19 = sbr.rel (0) target = $region13
  $region12: #{residual_block.1} parent=0 // pred_region
    _
  $region13: #{residual_block.1} parent=0 // pred_fallthru
    _
  // Predicated region
  $region14: #{residual_block.1} parent=0 // pred_check
    _
  $region15: #{residual_block.1} parent=0 // pred_check_branch
    %21 = sbr.rel (0) target = $region17
  $region16: #{residual_block.1} parent=0 // pred_region
    _
  $region17: #{residual_block.1} parent=0 // pred_fallthru
    _
  // Predicated region
  $region18: #{residual_block.1} parent=0 // pred_check
    _
  $region19: #{residual_block.1} parent=0 // pred_check_branch
    %23 = sbr.rel (0) target = $region21
  $region20: #{residual_block.1} parent=0 // pred_region
    _
  $region21: #{residual_block.1} parent=0 // pred_fallthru
    _
  // Predicated region
  $region22: #{residual_block.1} parent=0 // pred_check
    _
  $region23: #{residual_block.1} parent=0 // pred_check_branch
    %25 = sbr.rel (0) target = $region25
  $region24: #{residual_block.1} parent=0 // pred_region
    _
  $region25: #{residual_block.1} parent=0 // pred_fallthru
    _
  // Predicated region
  $region26: #{residual_block.1} parent=0 // pred_check
    _
  $region27: #{residual_block.1} parent=0 // pred_check_branch
    %27 = sbr.rel (0) target = $region29
  $region28: #{residual_block.1} parent=0 // pred_region
    _
  $region29: #{residual_block.1} parent=0 // pred_fallthru
    _
  // Predicated region
  $region30: #{residual_block.1} parent=0 // pred_check
    _
  $region31: #{residual_block.1} parent=0 // pred_check_branch
    %29 = sbr.rel (0) target = $region33
  $region32: #{residual_block.1} parent=0 // pred_region
    _
  $region33: #{residual_block.1} parent=0 // pred_fallthru
    _
  // Predicated region
  $region34: #{residual_block.1} parent=0 // pred_check
    _
  $region35: #{residual_block.1} parent=0 // pred_check_branch
    %31 = sbr.rel (0) target = $region37
  $region36: #{residual_block.1} parent=0 // pred_region
    _
  $region37: #{residual_block.1} parent=0 // pred_fallthru
    _
  %v32 = vld [vmem:[%s7] sm:$0x7]
  %v33 = vld [vmem:[%s1] sm:$0xff]
  %v34 = vld [vmem:[%s0] sm:$0xff]
  %v35 = vld [vmem:[%s0 + $0x8] sm:$0xff]
  %v36 = vld [vmem:[%s0 + $0x10] sm:$0xff]
  %v37 = vld [vmem:[%s0 + $0x18] sm:$0xff]
  %v38 = vld [vmem:[%s0 + $0x20] sm:$0xff]
  %v39 = vld [vmem:[%s0 + $0x28] sm:$0xff]
  %v40 = vld [vmem:[%s0 + $0x30] sm:$0xff]
  %v41 = vld [vmem:[%s0 + $0x38] sm:$0xff]
  %v42 = vld [vmem:[%s0 + $0x40] sm:$0xff]
  %v43 = vld [vmem:[%s0 + $0x48] sm:$0xff]
  %v44 = vld [vmem:[%s0 + $0x50] sm:$0xff]
  %v45 = vld [vmem:[%s0 + $0x58] sm:$0xff]
  %v46 = vld [vmem:[%s0 + $0x60] sm:$0xff]
  %v47 = vld [vmem:[%s0 + $0x68] sm:$0xff]
  %v48 = vld [vmem:[%s0 + $0x70] sm:$0xff]
  %v49 = vld [vmem:[%s0 + $0x78] sm:$0xff]
  %v50 = vld [vmem:[%s0 + $0x80] sm:$0xff]
  %v51 = vld [vmem:[%s0 + $0x88] sm:$0xff]
  %v52 = vld [vmem:[%s0 + $0x90] sm:$0xff]
  %v53 = vld [vmem:[%s0 + $0x98] sm:$0xff]
  %v54 = vld [vmem:[%s0 + $0xa0] sm:$0xff]
  %v55 = vld [vmem:[%s0 + $0xa8] sm:$0xff]
  %v56 = vld [vmem:[%s0 + $0xb0] sm:$0xff]
  %v57 = vld [vmem:[%s0 + $0xb8] sm:$0xff]
  %v58 = vld [vmem:[%s0 + $0xc0] sm:$0xff]
  %v59 = vld [vmem:[%s0 + $0xc8] sm:$0xff]
  %v60 = vld [vmem:[%s0 + $0xd0] sm:$0xff]
  %vm61 = vcmask 588800
  %v63 = vsel %vm61, %v33, 0
  %65 = vmatprep.subr.mxu0 %v35
  %66 = vmatpush1.msra.mxu0 %v34
  %67 = vmatprep.subr.mxu0 %v38
  %68 = vmatpush1.msra.mxu0 %v37
  %69 = vmatprep.subr.mxu0 %v41
  %70 = vmatpush1.msra.mxu0 %v40
  %71 = vmatprep.subr.mxu0 %v44
  %72 = vmatpush1.msra.mxu0 %v43
  %73 = vmatprep.subr.mxu0 %v47
  %74 = vmatpush1.msra.mxu0 %v46
  %75 = vmatprep.subr.mxu0 %v50
  %76 = vmatpush1.msra.mxu0 %v49
  %77 = vmatprep.subr.mxu0 %v53
  %78 = vmatpush1.msra.mxu0 %v52
  %79 = vmatprep.subr.mxu0 %v56
  %80 = vmatpush1.msra.mxu0 %v55
  %81 = vmatprep.subr.mxu0 %v59
  %82 = vmatpush1.msra.mxu0 %v58
  %83 = vmatprep.subr.mxu0 0.0
  %84 = vmatpush1.msra.mxu0 0.0
  %85 = vmatprep.subr.mxu0 0.0
  %86 = vmatpush1.msra.mxu0 0.0
  %87 = vmatprep.subr.mxu0 0.0
  %88 = vmatpush1.msra.mxu0 0.0
  %89 = vmatprep.subr.mxu0 0.0
  %90 = vmatpush1.msra.mxu0 0.0
  %91 = vmatprep.subr.mxu0 0.0
  %92 = vmatpush1.msra.mxu0 0.0
  %93 = vmatprep.subr.mxu0 0.0
  %94 = vmatpush1.msra.mxu0 0.0
  %95 = vmatprep.subr.mxu0 0.0
  %96 = vmatpush1.msra.mxu0 0.0
  %97 = vmatprep.subr.mxu0 0.0
  %98 = vmatpush1.msra.mxu0 0.0
  %99 = vmatprep.subr.mxu0 0.0
  %100 = vmatpush1.msra.mxu0 0.0
  %101 = vmatprep.subr.mxu0 0.0
  %102 = vmatpush1.msra.mxu0 0.0
  %103 = vmatprep.subr.mxu0 0.0
  %104 = vmatpush1.msra.mxu0 0.0
  %105 = vmatprep.subr.mxu0 0.0
  %106 = vmatpush1.msra.mxu0 0.0
  %107 = vmatprep.subr.mxu0 0.0
  %108 = vmatpush1.msra.mxu0 0.0
  %109 = vmatprep.subr.mxu0 0.0
  %110 = vmatpush1.msra.mxu0 0.0
  %111 = vmatprep.subr.mxu0 0.0
  %112 = vmatpush1.msra.mxu0 0.0
  %113 = vmatprep.subr.mxu0 0.0
  %114 = vmatpush1.msra.mxu0 0.0
  %115 = vmatprep.subr.mxu0 0.0
  %116 = vmatpush1.msra.mxu0 0.0
  %117 = vmatprep.subr.mxu0 0.0
  %118 = vmatpush1.msra.mxu0 0.0
  %119 = vmatprep.subr.mxu0 0.0
  %120 = vmatpush1.msra.mxu0 0.0
  %121 = vmatprep.subr.mxu0 0.0
  %122 = vmatpush1.msra.mxu0 0.0
  %123 = vmatprep.subr.mxu0 0.0
  %124 = vmatpush1.msra.mxu0 0.0
  %125 = vmatprep.subr.mxu0 0.0
  %126 = vmatpush1.msra.mxu0 0.0
  %127 = vmatprep.subr.mxu0 0.0
  %128 = vmatpush1.msra.mxu0 0.0
  %129 = vmatprep.mubr.f32.mxu0 0.0
  %130 = vmatmul.mubr.f32.gmra.mrb[0].mxu0 %v63
  %v131 = vpop.f32.mrb[0].mxu0
  %v132 = vadd.f32 0.0, %v131
  %v133 = vpop.f32.mrb[0].mxu0
  %v134 = vadd.f32 0.0, %v133
  %135 = vdwg.mxu0
  %136 = vmatprep.subr.mxu0 0.0
  %137 = vmatpush1.msra.mxu0 %v36
  %138 = vmatprep.subr.mxu0 0.0
  %139 = vmatpush1.msra.mxu0 %v39
  %140 = vmatprep.subr.mxu0 0.0
  %141 = vmatpush1.msra.mxu0 %v42
  %142 = vmatprep.subr.mxu0 0.0
  %143 = vmatpush1.msra.mxu0 %v45
  %144 = vmatprep.subr.mxu0 0.0
  %145 = vmatpush1.msra.mxu0 %v48
  %146 = vmatprep.subr.mxu0 0.0
  %147 = vmatpush1.msra.mxu0 %v51
  %148 = vmatprep.subr.mxu0 0.0
  %149 = vmatpush1.msra.mxu0 %v54
  %150 = vmatprep.subr.mxu0 0.0
  %151 = vmatpush1.msra.mxu0 %v57
  %152 = vmatprep.subr.mxu0 0.0
  %153 = vmatpush1.msra.mxu0 %v60
  %154 = vmatprep.subr.mxu0 0.0
  %155 = vmatpush1.msra.mxu0 0.0
  %156 = vmatprep.subr.mxu0 0.0
  %157 = vmatpush1.msra.mxu0 0.0
  %158 = vmatprep.subr.mxu0 0.0
  %159 = vmatpush1.msra.mxu0 0.0
  %160 = vmatprep.subr.mxu0 0.0
  %161 = vmatpush1.msra.mxu0 0.0
  %162 = vmatprep.subr.mxu0 0.0
  %163 = vmatpush1.msra.mxu0 0.0
  %164 = vmatprep.subr.mxu0 0.0
  %165 = vmatpush1.msra.mxu0 0.0
  %166 = vmatprep.subr.mxu0 0.0
  %167 = vmatpush1.msra.mxu0 0.0
  %168 = vmatprep.subr.mxu0 0.0
  %169 = vmatpush1.msra.mxu0 0.0
  %170 = vmatprep.subr.mxu0 0.0
  %171 = vmatpush1.msra.mxu0 0.0
  %172 = vmatprep.subr.mxu0 0.0
  %173 = vmatpush1.msra.mxu0 0.0
  %174 = vmatprep.subr.mxu0 0.0
  %175 = vmatpush1.msra.mxu0 0.0
  %176 = vmatprep.subr.mxu0 0.0
  %177 = vmatpush1.msra.mxu0 0.0
  %178 = vmatprep.subr.mxu0 0.0
  %179 = vmatpush1.msra.mxu0 0.0
  %180 = vmatprep.subr.mxu0 0.0
  %181 = vmatpush1.msra.mxu0 0.0
  %182 = vmatprep.subr.mxu0 0.0
  %183 = vmatpush1.msra.mxu0 0.0
  %184 = vmatprep.subr.mxu0 0.0
  %185 = vmatpush1.msra.mxu0 0.0
  %186 = vmatprep.subr.mxu0 0.0
  %187 = vmatpush1.msra.mxu0 0.0
  %188 = vmatprep.subr.mxu0 0.0
  %189 = vmatpush1.msra.mxu0 0.0
  %190 = vmatprep.subr.mxu0 0.0
  %191 = vmatpush1.msra.mxu0 0.0
  %192 = vmatprep.subr.mxu0 0.0
  %193 = vmatpush1.msra.mxu0 0.0
  %194 = vmatprep.subr.mxu0 0.0
  %195 = vmatpush1.msra.mxu0 0.0
  %196 = vmatprep.subr.mxu0 0.0
  %197 = vmatpush1.msra.mxu0 0.0
  %198 = vmatprep.subr.mxu0 0.0
  %199 = vmatpush1.msra.mxu0 0.0
  %200 = vmatprep.mubr.f32.mxu0 0.0
  %201 = vmatmul.mubr.f32.gmra.mrb[0].mxu0 %v63
  %v202 = vpop.f32.mrb[0].mxu0
  %v203 = vadd.f32 0.0, %v202
  %v204 = vpop.f32.mrb[0].mxu0
  %205 = vdwg.mxu0
  %v207 = vlaneseq
  %v208 = vshrl.u32 %v207, 7
  %v209 = vsub.s32 0, %v208
  %v210 = vrot.slane %v32, %v209
  %v211 = vlaneseq
  %v212 = vshrl.u32 %v211, 7
  %v213 = vsub.s32 1, %v212
  %v214 = vrot.slane %v32, %v213
  %v215 = vlaneseq
  %v216 = vshrl.u32 %v215, 7
  %v217 = vsub.s32 2, %v216
  %v218 = vrot.slane %v32, %v217
  %v222 = vmul.f32 %v132, %v210
  %v223 = vmul.f32 %v134, %v214
  %v224 = vmul.f32 %v203, %v218
  %v225 = vadd.f32 %v222, %v223
  %vm226 = vcmask 556032
  %v227 = vsel %vm226, %v224, 0.0
  %v228 = vadd.f32 %v225, %v227
  %229 = vadd.xlane.f32.xlu0 %v228
  %v230 = vpop.xlane.xlu0 %229
  %v231 = vmul.f32 %v222, %v132
  %v232 = vmul.f32 %v223, %v134
  %v233 = vmul.f32 %v224, %v203
  %v234 = vadd.f32 %v231, %v232
  %v235 = vsel %vm226, %v233, 0.0
  %v236 = vadd.f32 %v234, %v235
  %237 = vadd.xlane.f32.xlu0 %v236
  %v238 = vpop.xlane.xlu0 %237
  %v239 = vrot.slane %v230, 4
  %v240 = vadd.f32 %v230, %v239
  %v241 = vrot.slane %v238, 4
  %v242 = vadd.f32 %v238, %v241
  %v243 = vmul.f32 %v240, 0.001953125
  %v244 = vmul.f32 %v242, 0.001953125
  %v245 = vmul.f32 %v243, %v243
  %v246 = vsub.f32 %v244, %v245
  %v247 = vmax.f32 %v246, 0.0
  %249 = vset.pattern.permute.xlu0 0
  %250 = vperm.xlu0 %249, %v243
  %v251 = vpop.permute.xlu0 %250
  %v253 = vsub.f32 %v132, %v251
  %v254 = vsub.f32 %v134, %v251
  %v255 = vsub.f32 %v203, %v251
  %v256 = vadd.f32 %v247, 1e-05
  %v257 = vrsqrt.pop %v256
  %259 = vset.pattern.permute.xlu0 0
  %260 = vperm.xlu0 %259, %v257
  %v261 = vpop.permute.xlu0 %260
  %v263 = vmul.f32 %v253, %v261
  %v264 = vmul.f32 %v254, %v261
  %v265 = vmul.f32 %v255, %v261
  %v266 = vld [vmem:[%s2] sm:$0xff]
  %268 = vset.pattern.permute.xlu0 0
  %269 = vperm.xlu0 %268, %v266
  %v270 = vpop.permute.xlu0 %269
  %v272 = vmul.f32 %v263, %v270
  %v273 = vmul.f32 %v264, %v270
  %v274 = vmul.f32 %v265, %v270
  %v275 = vld [vmem:[%s3] sm:$0xff]
  %277 = vset.pattern.permute.xlu0 0
  %278 = vperm.xlu0 %277, %v275
  %v279 = vpop.permute.xlu0 %278
  %v281 = vadd.f32 %v272, %v279
  %v282 = vadd.f32 %v273, %v279
  %v283 = vadd.f32 %v274, %v279
  %v284 = vmax.f32 %v281, 0.0
  %v285 = vmax.f32 %v282, 0.0
  %v286 = vmax.f32 %v283, 0.0
  %vm287 = vcmask 154624
  %288 = vst.msk [vmem:[#allocation2] sm:$0xff] %vm287, 0.0
  %vm289 = vcmask 867872
  %290 = vst.msk [vmem:[#allocation2 + $0x10] sm:$0xff] %vm289, 0.0
  %v291 = vld [vmem:[%s8] sm:$0x7]
  %v293 = vlaneseq
  %v294 = vshrl.u32 %v293, 7
  %v295 = vsub.s32 0, %v294
  %v296 = vrot.slane %v291, %v295
  %v297 = vlaneseq
  %v298 = vshrl.u32 %v297, 7
  %v299 = vsub.s32 1, %v298
  %v300 = vrot.slane %v291, %v299
  %v301 = vlaneseq
  %v302 = vshrl.u32 %v301, 7
  %v303 = vsub.s32 2, %v302
  %v304 = vrot.slane %v291, %v303
  %v308 = vmul.f32 %v284, %v296
  %v309 = vmul.f32 %v285, %v300
  %v310 = vmul.f32 %v286, %v304
  %314 = vrot.lane.b32.xlu0 %v308, 19
  %v315 = vpop.permute.xlu0 %314
  %316 = vrot.lane.b32.xlu0 %v309, 19
  %v317 = vpop.permute.xlu0 %316
  %318 = vrot.lane.b32.xlu0 %v310, 19
  %v319 = vpop.permute.xlu0 %318
  %v320 = vsel %vm287, %v315, %v317
  %v321 = vsel %vm287, %v317, %v319
  %vm325 = vcmask 1047704
  %326 = vst.msk [vmem:[#allocation2] sm:$0xff] %vm325, %v315
  %327 = vst [vmem:[#allocation2 + $0x8] sm:$0xff] %v320
  %328 = vst.msk [vmem:[#allocation2 + $0x10] sm:$0xff] %vm226, %v321
  %v329 = vld [vmem:[#allocation2] sm:$0xff]
  %v330 = vld [vmem:[#allocation2 + $0x8] sm:$0xff]
  %v331 = vld [vmem:[#allocation2 + $0x10] sm:$0xff]
  %332 = vst [vmem:[#allocation3] sm:$0xff] %v329
  %333 = vst [vmem:[#allocation3 + $0x8] sm:$0xff] %v330
  %334 = vst.msk [vmem:[#allocation3 + $0x10] sm:$0xff] %vm226, %v331
  %v335 = vld [vmem:[#allocation2] sm:$0xff]
  %v336 = vld [vmem:[#allocation2 + $0x8] sm:$0xff]
  %v337 = vld [vmem:[#allocation2 + $0x10] sm:$0xff]
  %341 = vrot.lane.b32.xlu0 %v335, 127
  %v342 = vpop.permute.xlu0 %341
  %343 = vrot.lane.b32.xlu0 %v336, 127
  %v344 = vpop.permute.xlu0 %343
  %345 = vrot.lane.b32.xlu0 %v337, 127
  %v346 = vpop.permute.xlu0 %345
  %vm347 = vcmask 1039360
  %v348 = vsel %vm347, %v342, %v344
  %v349 = vsel %vm347, %v344, %v346
  %353 = vst [vmem:[#allocation3 + $0x18] sm:$0xff] %v348
  %354 = vst [vmem:[#allocation3 + $0x20] sm:$0xff] %v349
  %355 = vst.msk [vmem:[#allocation3 + $0x28] sm:$0xff] %vm226, %v346
  %v356 = vld [vmem:[#allocation2] sm:$0xff]
  %v357 = vld [vmem:[#allocation2 + $0x8] sm:$0xff]
  %v358 = vld [vmem:[#allocation2 + $0x10] sm:$0xff]
  %362 = vrot.lane.b32.xlu0 %v356, 126
  %v363 = vpop.permute.xlu0 %362
  %364 = vrot.lane.b32.xlu0 %v357, 126
  %v365 = vpop.permute.xlu0 %364
  %366 = vrot.lane.b32.xlu0 %v358, 126
  %v367 = vpop.permute.xlu0 %366
  %vm368 = vcmask 1031168
  %v369 = vsel %vm368, %v363, %v365
  %v370 = vsel %vm368, %v365, %v367
  %374 = vst [vmem:[#allocation3 + $0x30] sm:$0xff] %v369
  %375 = vst [vmem:[#allocation3 + $0x38] sm:$0xff] %v370
  %376 = vst.msk [vmem:[#allocation3 + $0x40] sm:$0xff] %vm226, %v367
  %v377 = vld [vmem:[#allocation2] sm:$0xff]
  %v378 = vld [vmem:[#allocation2 + $0x8] sm:$0xff]
  %v379 = vld [vmem:[#allocation2 + $0x10] sm:$0xff]
  %383 = vrot.lane.b32.xlu0 %v377, 110
  %v384 = vpop.permute.xlu0 %383
  %385 = vrot.lane.b32.xlu0 %v378, 110
  %v386 = vpop.permute.xlu0 %385
  %387 = vrot.lane.b32.xlu0 %v379, 110
  %v388 = vpop.permute.xlu0 %387
  %vm389 = vcmask 900096
  %v390 = vsel %vm389, %v384, %v386
  %v391 = vsel %vm389, %v386, %v388
  %395 = vst [vmem:[#allocation3 + $0x48] sm:$0xff] %v390
  %396 = vst [vmem:[#allocation3 + $0x50] sm:$0xff] %v391
  %397 = vst.msk [vmem:[#allocation3 + $0x58] sm:$0xff] %vm226, %v388
  %v398 = vld [vmem:[#allocation2] sm:$0xff]
  %v399 = vld [vmem:[#allocation2 + $0x8] sm:$0xff]
  %v400 = vld [vmem:[#allocation2 + $0x10] sm:$0xff]
  %404 = vrot.lane.b32.xlu0 %v398, 109
  %v405 = vpop.permute.xlu0 %404
  %406 = vrot.lane.b32.xlu0 %v399, 109
  %v407 = vpop.permute.xlu0 %406
  %408 = vrot.lane.b32.xlu0 %v400, 109
  %v409 = vpop.permute.xlu0 %408
  %vm410 = vcmask 891904
  %v411 = vsel %vm410, %v405, %v407
  %v412 = vsel %vm410, %v407, %v409
  %416 = vst [vmem:[#allocation3 + $0x60] sm:$0xff] %v411
  %417 = vst [vmem:[#allocation3 + $0x68] sm:$0xff] %v412
  %418 = vst.msk [vmem:[#allocation3 + $0x70] sm:$0xff] %vm226, %v409
  %v419 = vld [vmem:[#allocation2] sm:$0xff]
  %v420 = vld [vmem:[#allocation2 + $0x8] sm:$0xff]
  %v421 = vld [vmem:[#allocation2 + $0x10] sm:$0xff]
  %425 = vrot.lane.b32.xlu0 %v419, 108
  %v426 = vpop.permute.xlu0 %425
  %427 = vrot.lane.b32.xlu0 %v420, 108
  %v428 = vpop.permute.xlu0 %427
  %429 = vrot.lane.b32.xlu0 %v421, 108
  %v430 = vpop.permute.xlu0 %429
  %vm431 = vcmask 883712
  %v432 = vsel %vm431, %v426, %v428
  %v433 = vsel %vm431, %v428, %v430
  %437 = vst [vmem:[#allocation3 + $0x78] sm:$0xff] %v432
  %438 = vst [vmem:[#allocation3 + $0x80] sm:$0xff] %v433
  %439 = vst.msk [vmem:[#allocation3 + $0x88] sm:$0xff] %vm226, %v430
  %v440 = vld [vmem:[#allocation2] sm:$0xff]
  %v441 = vld [vmem:[#allocation2 + $0x8] sm:$0xff]
  %v442 = vld [vmem:[#allocation2 + $0x10] sm:$0xff]
  %446 = vrot.lane.b32.xlu0 %v440, 92
  %v447 = vpop.permute.xlu0 %446
  %448 = vrot.lane.b32.xlu0 %v441, 92
  %v449 = vpop.permute.xlu0 %448
  %450 = vrot.lane.b32.xlu0 %v442, 92
  %v451 = vpop.permute.xlu0 %450
  %vm452 = vcmask 752640
  %v453 = vsel %vm452, %v447, %v449
  %v454 = vsel %vm452, %v449, %v451
  %458 = vst [vmem:[#allocation3 + $0x90] sm:$0xff] %v453
  %459 = vst [vmem:[#allocation3 + $0x98] sm:$0xff] %v454
  %460 = vst.msk [vmem:[#allocation3 + $0xa0] sm:$0xff] %vm226, %v451
  %v461 = vld [vmem:[#allocation2] sm:$0xff]
  %v462 = vld [vmem:[#allocation2 + $0x8] sm:$0xff]
  %v463 = vld [vmem:[#allocation2 + $0x10] sm:$0xff]
  %467 = vrot.lane.b32.xlu0 %v461, 91
  %v468 = vpop.permute.xlu0 %467
  %469 = vrot.lane.b32.xlu0 %v462, 91
  %v470 = vpop.permute.xlu0 %469
  %471 = vrot.lane.b32.xlu0 %v463, 91
  %v472 = vpop.permute.xlu0 %471
  %vm473 = vcmask 744448
  %v474 = vsel %vm473, %v468, %v470
  %v475 = vsel %vm473, %v470, %v472
  %479 = vst [vmem:[#allocation3 + $0xa8] sm:$0xff] %v474
  %480 = vst [vmem:[#allocation3 + $0xb0] sm:$0xff] %v475
  %481 = vst.msk [vmem:[#allocation3 + $0xb8] sm:$0xff] %vm226, %v472
  %v482 = vld [vmem:[#allocation2] sm:$0xff]
  %v483 = vld [vmem:[#allocation2 + $0x8] sm:$0xff]
  %v484 = vld [vmem:[#allocation2 + $0x10] sm:$0xff]
  %488 = vrot.lane.b32.xlu0 %v482, 90
  %v489 = vpop.permute.xlu0 %488
  %490 = vrot.lane.b32.xlu0 %v483, 90
  %v491 = vpop.permute.xlu0 %490
  %492 = vrot.lane.b32.xlu0 %v484, 90
  %v493 = vpop.permute.xlu0 %492
  %vm494 = vcmask 736256
  %v495 = vsel %vm494, %v489, %v491
  %v496 = vsel %vm494, %v491, %v493
  %500 = vst [vmem:[#allocation3 + $0xc0] sm:$0xff] %v495
  %501 = vst [vmem:[#allocation3 + $0xc8] sm:$0xff] %v496
  %502 = vst.msk [vmem:[#allocation3 + $0xd0] sm:$0xff] %vm226, %v493
  %v503 = vld [vmem:[%s4] sm:$0xff]
  %v504 = vld [vmem:[#allocation3] sm:$0xff]
  %v505 = vld [vmem:[#allocation3 + $0x8] sm:$0xff]
  %v506 = vld [vmem:[#allocation3 + $0x10] sm:$0xff]
  %v507 = vld [vmem:[#allocation3 + $0x18] sm:$0xff]
  %v508 = vld [vmem:[#allocation3 + $0x20] sm:$0xff]
  %v509 = vld [vmem:[#allocation3 + $0x28] sm:$0xff]
  %v510 = vld [vmem:[#allocation3 + $0x30] sm:$0xff]
  %v511 = vld [vmem:[#allocation3 + $0x38] sm:$0xff]
  %v512 = vld [vmem:[#allocation3 + $0x40] sm:$0xff]
  %v513 = vld [vmem:[#allocation3 + $0x48] sm:$0xff]
  %v514 = vld [vmem:[#allocation3 + $0x50] sm:$0xff]
  %v515 = vld [vmem:[#allocation3 + $0x58] sm:$0xff]
  %v516 = vld [vmem:[#allocation3 + $0x60] sm:$0xff]
  %v517 = vld [vmem:[#allocation3 + $0x68] sm:$0xff]
  %v518 = vld [vmem:[#allocation3 + $0x70] sm:$0xff]
  %v519 = vld [vmem:[#allocation3 + $0x78] sm:$0xff]
  %v520 = vld [vmem:[#allocation3 + $0x80] sm:$0xff]
  %v521 = vld [vmem:[#allocation3 + $0x88] sm:$0xff]
  %v522 = vld [vmem:[#allocation3 + $0x90] sm:$0xff]
  %v523 = vld [vmem:[#allocation3 + $0x98] sm:$0xff]
  %v524 = vld [vmem:[#allocation3 + $0xa0] sm:$0xff]
  %v525 = vld [vmem:[#allocation3 + $0xa8] sm:$0xff]
  %v526 = vld [vmem:[#allocation3 + $0xb0] sm:$0xff]
  %v527 = vld [vmem:[#allocation3 + $0xb8] sm:$0xff]
  %v528 = vld [vmem:[#allocation3 + $0xc0] sm:$0xff]
  %v529 = vld [vmem:[#allocation3 + $0xc8] sm:$0xff]
  %v530 = vld [vmem:[#allocation3 + $0xd0] sm:$0xff]
  %v532 = vsel %vm61, %v503, 0
  %534 = vmatprep.subr.mxu0 %v505
  %535 = vmatpush1.msra.mxu0 %v504
  %536 = vmatprep.subr.mxu0 %v508
  %537 = vmatpush1.msra.mxu0 %v507
  %538 = vmatprep.subr.mxu0 %v511
  %539 = vmatpush1.msra.mxu0 %v510
  %540 = vmatprep.subr.mxu0 %v514
  %541 = vmatpush1.msra.mxu0 %v513
  %542 = vmatprep.subr.mxu0 %v517
  %543 = vmatpush1.msra.mxu0 %v516
  %544 = vmatprep.subr.mxu0 %v520
  %545 = vmatpush1.msra.mxu0 %v519
  %546 = vmatprep.subr.mxu0 %v523
  %547 = vmatpush1.msra.mxu0 %v522
  %548 = vmatprep.subr.mxu0 %v526
  %549 = vmatpush1.msra.mxu0 %v525
  %550 = vmatprep.subr.mxu0 %v529
  %551 = vmatpush1.msra.mxu0 %v528
  %552 = vmatprep.subr.mxu0 0.0
  %553 = vmatpush1.msra.mxu0 0.0
  %554 = vmatprep.subr.mxu0 0.0
  %555 = vmatpush1.msra.mxu0 0.0
  %556 = vmatprep.subr.mxu0 0.0
  %557 = vmatpush1.msra.mxu0 0.0
  %558 = vmatprep.subr.mxu0 0.0
  %559 = vmatpush1.msra.mxu0 0.0
  %560 = vmatprep.subr.mxu0 0.0
  %561 = vmatpush1.msra.mxu0 0.0
  %562 = vmatprep.subr.mxu0 0.0
  %563 = vmatpush1.msra.mxu0 0.0
  %564 = vmatprep.subr.mxu0 0.0
  %565 = vmatpush1.msra.mxu0 0.0
  %566 = vmatprep.subr.mxu0 0.0
  %567 = vmatpush1.msra.mxu0 0.0
  %568 = vmatprep.subr.mxu0 0.0
  %569 = vmatpush1.msra.mxu0 0.0
  %570 = vmatprep.subr.mxu0 0.0
  %571 = vmatpush1.msra.mxu0 0.0
  %572 = vmatprep.subr.mxu0 0.0
  %573 = vmatpush1.msra.mxu0 0.0
  %574 = vmatprep.subr.mxu0 0.0
  %575 = vmatpush1.msra.mxu0 0.0
  %576 = vmatprep.subr.mxu0 0.0
  %577 = vmatpush1.msra.mxu0 0.0
  %578 = vmatprep.subr.mxu0 0.0
  %579 = vmatpush1.msra.mxu0 0.0
  %580 = vmatprep.subr.mxu0 0.0
  %581 = vmatpush1.msra.mxu0 0.0
  %582 = vmatprep.subr.mxu0 0.0
  %583 = vmatpush1.msra.mxu0 0.0
  %584 = vmatprep.subr.mxu0 0.0
  %585 = vmatpush1.msra.mxu0 0.0
  %586 = vmatprep.subr.mxu0 0.0
  %587 = vmatpush1.msra.mxu0 0.0
  %588 = vmatprep.subr.mxu0 0.0
  %589 = vmatpush1.msra.mxu0 0.0
  %590 = vmatprep.subr.mxu0 0.0
  %591 = vmatpush1.msra.mxu0 0.0
  %592 = vmatprep.subr.mxu0 0.0
  %593 = vmatpush1.msra.mxu0 0.0
  %594 = vmatprep.subr.mxu0 0.0
  %595 = vmatpush1.msra.mxu0 0.0
  %596 = vmatprep.subr.mxu0 0.0
  %597 = vmatpush1.msra.mxu0 0.0
  %598 = vmatprep.mubr.f32.mxu0 0.0
  %599 = vmatmul.mubr.f32.gmra.mrb[0].mxu0 %v532
  %v600 = vpop.f32.mrb[0].mxu0
  %v601 = vadd.f32 0.0, %v600
  %v602 = vpop.f32.mrb[0].mxu0
  %v603 = vadd.f32 0.0, %v602
  %604 = vdwg.mxu0
  %605 = vmatprep.subr.mxu0 0.0
  %606 = vmatpush1.msra.mxu0 %v506
  %607 = vmatprep.subr.mxu0 0.0
  %608 = vmatpush1.msra.mxu0 %v509
  %609 = vmatprep.subr.mxu0 0.0
  %610 = vmatpush1.msra.mxu0 %v512
  %611 = vmatprep.subr.mxu0 0.0
  %612 = vmatpush1.msra.mxu0 %v515
  %613 = vmatprep.subr.mxu0 0.0
  %614 = vmatpush1.msra.mxu0 %v518
  %615 = vmatprep.subr.mxu0 0.0
  %616 = vmatpush1.msra.mxu0 %v521
  %617 = vmatprep.subr.mxu0 0.0
  %618 = vmatpush1.msra.mxu0 %v524
  %619 = vmatprep.subr.mxu0 0.0
  %620 = vmatpush1.msra.mxu0 %v527
  %621 = vmatprep.subr.mxu0 0.0
  %622 = vmatpush1.msra.mxu0 %v530
  %623 = vmatprep.subr.mxu0 0.0
  %624 = vmatpush1.msra.mxu0 0.0
  %625 = vmatprep.subr.mxu0 0.0
  %626 = vmatpush1.msra.mxu0 0.0
  %627 = vmatprep.subr.mxu0 0.0
  %628 = vmatpush1.msra.mxu0 0.0
  %629 = vmatprep.subr.mxu0 0.0
  %630 = vmatpush1.msra.mxu0 0.0
  %631 = vmatprep.subr.mxu0 0.0
  %632 = vmatpush1.msra.mxu0 0.0
  %633 = vmatprep.subr.mxu0 0.0
  %634 = vmatpush1.msra.mxu0 0.0
  %635 = vmatprep.subr.mxu0 0.0
  %636 = vmatpush1.msra.mxu0 0.0
  %637 = vmatprep.subr.mxu0 0.0
  %638 = vmatpush1.msra.mxu0 0.0
  %639 = vmatprep.subr.mxu0 0.0
  %640 = vmatpush1.msra.mxu0 0.0
  %641 = vmatprep.subr.mxu0 0.0
  %642 = vmatpush1.msra.mxu0 0.0
  %643 = vmatprep.subr.mxu0 0.0
  %644 = vmatpush1.msra.mxu0 0.0
  %645 = vmatprep.subr.mxu0 0.0
  %646 = vmatpush1.msra.mxu0 0.0
  %647 = vmatprep.subr.mxu0 0.0
  %648 = vmatpush1.msra.mxu0 0.0
  %649 = vmatprep.subr.mxu0 0.0
  %650 = vmatpush1.msra.mxu0 0.0
  %651 = vmatprep.subr.mxu0 0.0
  %652 = vmatpush1.msra.mxu0 0.0
  %653 = vmatprep.subr.mxu0 0.0
  %654 = vmatpush1.msra.mxu0 0.0
  %655 = vmatprep.subr.mxu0 0.0
  %656 = vmatpush1.msra.mxu0 0.0
  %657 = vmatprep.subr.mxu0 0.0
  %658 = vmatpush1.msra.mxu0 0.0
  %659 = vmatprep.subr.mxu0 0.0
  %660 = vmatpush1.msra.mxu0 0.0
  %661 = vmatprep.subr.mxu0 0.0
  %662 = vmatpush1.msra.mxu0 0.0
  %663 = vmatprep.subr.mxu0 0.0
  %664 = vmatpush1.msra.mxu0 0.0
  %665 = vmatprep.subr.mxu0 0.0
  %666 = vmatpush1.msra.mxu0 0.0
  %667 = vmatprep.subr.mxu0 0.0
  %668 = vmatpush1.msra.mxu0 0.0
  %669 = vmatprep.mubr.f32.mxu0 0.0
  %670 = vmatmul.mubr.f32.gmra.mrb[0].mxu0 %v532
  %v671 = vpop.f32.mrb[0].mxu0
  %v672 = vadd.f32 0.0, %v671
  %v673 = vpop.f32.mrb[0].mxu0
  %674 = vdwg.mxu0
  %v675 = vmul.f32 %v601, %v210
  %v676 = vmul.f32 %v603, %v214
  %v677 = vmul.f32 %v672, %v218
  %v678 = vadd.f32 %v675, %v676
  %v679 = vsel %vm226, %v677, 0.0
  %v680 = vadd.f32 %v678, %v679
  %681 = vadd.xlane.f32.xlu0 %v680
  %v682 = vpop.xlane.xlu0 %681
  %v683 = vmul.f32 %v675, %v601
  %v684 = vmul.f32 %v676, %v603
  %v685 = vmul.f32 %v677, %v672
  %v686 = vadd.f32 %v683, %v684
  %v687 = vsel %vm226, %v685, 0.0
  %v688 = vadd.f32 %v686, %v687
  %689 = vadd.xlane.f32.xlu0 %v688
  %v690 = vpop.xlane.xlu0 %689
  %v691 = vrot.slane %v682, 4
  %v692 = vadd.f32 %v682, %v691
  %v693 = vrot.slane %v690, 4
  %v694 = vadd.f32 %v690, %v693
  %v695 = vmul.f32 %v692, 0.001953125
  %v696 = vmul.f32 %v694, 0.001953125
  %v697 = vmul.f32 %v695, %v695
  %v698 = vsub.f32 %v696, %v697
  %v699 = vmax.f32 %v698, 0.0
  %701 = vset.pattern.permute.xlu0 0
  %702 = vperm.xlu0 %701, %v695
  %v703 = vpop.permute.xlu0 %702
  %v705 = vsub.f32 %v601, %v703
  %v706 = vsub.f32 %v603, %v703
  %v707 = vsub.f32 %v672, %v703
  %v708 = vadd.f32 %v699, 1e-05
  %v709 = vrsqrt.pop %v708
  %711 = vset.pattern.permute.xlu0 0
  %712 = vperm.xlu0 %711, %v709
  %v713 = vpop.permute.xlu0 %712
  %v715 = vmul.f32 %v705, %v713
  %v716 = vmul.f32 %v706, %v713
  %v717 = vmul.f32 %v707, %v713
  %v718 = vld [vmem:[%s5] sm:$0xff]
  %720 = vset.pattern.permute.xlu0 0
  %721 = vperm.xlu0 %720, %v718
  %v722 = vpop.permute.xlu0 %721
  %v724 = vmul.f32 %v715, %v722
  %v725 = vmul.f32 %v716, %v722
  %v726 = vmul.f32 %v717, %v722
  %v727 = vld [vmem:[%s6] sm:$0xff]
  %729 = vset.pattern.permute.xlu0 0
  %730 = vperm.xlu0 %729, %v727
  %v731 = vpop.permute.xlu0 %730
  %v733 = vadd.f32 %v724, %v731
  %v734 = vadd.f32 %v725, %v731
  %v735 = vadd.f32 %v726, %v731
  %v736 = vld [vmem:[%s0 + $0x60] sm:$0xff]
  %v737 = vld [vmem:[%s0 + $0x68] sm:$0xff]
  %v738 = vld [vmem:[%s0 + $0x70] sm:$0xff]
  %v739 = vadd.f32 %v733, %v736
  %v740 = vadd.f32 %v734, %v737
  %v741 = vadd.f32 %v735, %v738
  %v742 = vmax.f32 %v739, 0.0
  %v743 = vmax.f32 %v740, 0.0
  %v744 = vmax.f32 %v741, 0.0
  %745 = vst [vmem:[%s9] sm:$0xff] %v742
  %746 = vst [vmem:[%s9 + $0x8] sm:$0xff] %v743
  %747 = vst.msk [vmem:[%s9 + $0x10] sm:$0xff] %vm226, %v744
  // Predicated region
  $region38: #{residual_block.1} parent=0 // pred_check
    _
  $region39: #{residual_block.1} parent=0 // pred_check_branch
    %749 = sbr.rel (0) target = $region41
  $region40: #{residual_block.1} parent=0 // pred_region
    _
  $region41: #{residual_block.1} parent=0 // pred_fallthru
    _
  // Predicated region
  $region42: #{residual_block.1} parent=0 // pred_check
    _
  $region43: #{residual_block.1} parent=0 // pred_check_branch
    %751 = sbr.rel (0) target = $region45
  $region44: #{residual_block.1} parent=0 // pred_region
    _
  $region45: #{residual_block.1} parent=0 // pred_fallthru
    _

</llo_original>
